<compile_context>
chip_gen: v7x
topology: tpu7x:2x2x1
jax: 0.10.0
libtpu: 0.0.40
codegen_flags: <defaults>
</compile_context>

<pallas_src>
import jax
import jax.numpy as jnp
from jax.experimental import pallas as pl
from jax.experimental.pallas import tpu as pltpu

HIDDEN = 256


def _round_up(x, m):
    return ((x + m - 1) // m) * m


def _value_kernel(x_ref, w1_ref, b1_ref, w2_ref, b2_ref,
                  w3_ref, b3_ref, w4_ref, b4_ref, o_ref):
    """One batch-tile of the fused MLP forward.

    x_ref:        (TB, Kp)   bf16
    w1_ref:       (Kp, 256)  bf16      b1_ref: (1, 256) f32
    w2_ref/w3_ref:(256, 256) bf16      b2/b3:  (1, 256) f32
    w4_ref:       (1, 256)   f32 (row) b4_ref: (1, 1)   f32
    o_ref:        (TB, 1)    f32
    """
    x = x_ref[...]

    # Layer 1: bf16 x bf16 -> f32 accumulate on MXU; bias + ReLU in f32.
    h = jnp.dot(x, w1_ref[...], preferred_element_type=jnp.float32) + b1_ref[...]
    h = jnp.maximum(h, 0.0).astype(jnp.bfloat16)

    # Layer 2
    h = jnp.dot(h, w2_ref[...], preferred_element_type=jnp.float32) + b2_ref[...]
    h = jnp.maximum(h, 0.0).astype(jnp.bfloat16)

    # Layer 3 (keep f32 result for the final VPU reduction)
    h = jnp.dot(h, w3_ref[...], preferred_element_type=jnp.float32) + b3_ref[...]
    h = jnp.maximum(h, 0.0)

    # Final 256 -> 1 projection as multiply + lane reduction (skip N=1 MXU matmul).
    q = jnp.sum(h * w4_ref[...], axis=-1, keepdims=True) + b4_ref[...]
    o_ref[...] = q.astype(o_ref.dtype)


def value_forward(x, params, tb=512):
    """Run the Pallas kernel. x: (B, obs+goal) float32. Returns (B, 1) float32."""
    (w1, b1), (w2, b2), (w3, b3), (w4, b4) = params
    B, K = x.shape

    # Pad feature dim to a lane/MXU-friendly multiple of 128.
    Kp = _round_up(max(K, 128), 128)

    # Batch tile size: multiple of 8 sublanes, capped at `tb`; pad B to a tile multiple.
    TB = min(tb, _round_up(B, 8))
    B_pad = _round_up(B, TB)

    # Prepare operands: pad + cast matmul inputs to bf16, keep bias / last layer f32.
    x_p = jnp.zeros((B_pad, Kp), jnp.float32).at[:B, :K].set(x).astype(jnp.bfloat16)
    w1_p = jnp.zeros((Kp, HIDDEN), jnp.float32).at[:K, :].set(w1).astype(jnp.bfloat16)
    w2_p = w2.astype(jnp.bfloat16)
    w3_p = w3.astype(jnp.bfloat16)
    w4_row = w4.reshape(1, HIDDEN) if w4.shape == (HIDDEN, 1) else w4.reshape(1, HIDDEN)

    grid = (B_pad // TB,)

    def resident(shape):
        # Constant block index: weight/bias is DMA'd once and stays in VMEM.
        return pl.BlockSpec(shape, lambda i: (0, 0))

    out_pad = pl.pallas_call(
        _value_kernel,
        out_shape=jax.ShapeDtypeStruct((B_pad, 1), jnp.float32),
        grid=grid,
        in_specs=[
            pl.BlockSpec((TB, Kp), lambda i: (i, 0)),      # x tile (pipelined)
            resident((Kp, HIDDEN)),                        # w1
            resident((1, HIDDEN)),                         # b1
            resident((HIDDEN, HIDDEN)),                    # w2
            resident((1, HIDDEN)),                         # b2
            resident((HIDDEN, HIDDEN)),                    # w3
            resident((1, HIDDEN)),                         # b3
            resident((1, HIDDEN)),                         # w4 (as row, f32)
            resident((1, 1)),                              # b4
        ],
        out_specs=pl.BlockSpec((TB, 1), lambda i: (i, 0)),
        compiler_params=pltpu.CompilerParams(
            dimension_semantics=("parallel",),
            vmem_limit_bytes=64 * 1024 * 1024,
        ),
    )(x_p, w1_p, b1, w2_p, b2, w3_p, b3, w4_row, b4)

    return out_pad[:B]


def _xavier_uniform(key, fan_in, fan_out, gain=1.0):
    # Matches torch.nn.init.xavier_uniform_ on a (out, in) weight, stored as
    # (in, out) so the kernel computes x @ W.
    bound = gain * jnp.sqrt(6.0 / (fan_in + fan_out))
    return jax.random.uniform(key, (fan_in, fan_out), jnp.float32, -bound, bound)


def init_params(key, in_dim):
    k1, k2, k3, k4 = jax.random.split(key, 4)
    dims = [(in_dim, HIDDEN), (HIDDEN, HIDDEN), (HIDDEN, HIDDEN), (HIDDEN, 1)]
    keys = [k1, k2, k3, k4]
    params = []
    for k, (fi, fo) in zip(keys, dims):
        w = _xavier_uniform(k, fi, fo)
        b = jnp.zeros((1, fo), jnp.float32)   # constant_(bias, 0)
        params.append((w, b))
    return params


def reference_forward(x, params):
    """Pure-JAX f32 reference for correctness check."""
    (w1, b1), (w2, b2), (w3, b3), (w4, b4) = params
    h = jnp.maximum(x @ w1 + b1, 0.0)
    h = jnp.maximum(h @ w2 + b2, 0.0)
    h = jnp.maximum(h @ w3 + b3, 0.0)
    return h @ w4 + b4


if __name__ == "__main__":
    key = jax.random.PRNGKey(0)

    # env_params: small synthetic sizes
    obs_dim, goal_dim = 10, 3
    in_dim = obs_dim + goal_dim
    batch = 2

    k_params, k_x = jax.random.split(key)
    params = init_params(k_params, in_dim)
    x = jax.random.normal(k_x, (batch, in_dim), jnp.float32)

    q = value_forward(x, params)
    q = jax.block_until_ready(q)

    q_ref = reference_forward(x, params)
    assert q.shape == (batch, 1), q.shape
    # bf16 MXU inputs (f32 accumulation) -> compare to f32 reference with a
    # tolerance that covers bf16 input quantization across 4 layers.
    assert jnp.allclose(q, q_ref, atol=5e-2, rtol=5e-2), (q, q_ref)

    print("KERNEL_OK")
</pallas_src>

<mosaic_0001>
module attributes {stable_mosaic.version = 11 : i64} {
  func.func @_value_kernel(%arg0: i32, %arg1: memref<8x128xbf16, #tpu.memory_space<vmem>>, %arg2: memref<128x256xbf16, #tpu.memory_space<vmem>>, %arg3: memref<1x256xf32, #tpu.memory_space<vmem>>, %arg4: memref<256x256xbf16, #tpu.memory_space<vmem>>, %arg5: memref<1x256xf32, #tpu.memory_space<vmem>>, %arg6: memref<256x256xbf16, #tpu.memory_space<vmem>>, %arg7: memref<1x256xf32, #tpu.memory_space<vmem>>, %arg8: memref<1x256xf32, #tpu.memory_space<vmem>>, %arg9: memref<1x1xf32, #tpu.memory_space<vmem>>, %arg10: memref<8x1xf32, #tpu.memory_space<vmem>>) attributes {dimension_semantics = [#tpu.dimension_semantics<parallel>], iteration_bounds = array<i64: 1>, scalar_prefetch = 0 : i64, scratch_operands = 0 : i64, tpu.core_type = #tpu.core_type<tc>, window_params = [{transform_indices = @transform_0, window_bounds = array<i64: 8, 128>}, {pipeline_mode = #tpu.pipeline_mode<synchronous>, transform_indices = @transform_1, window_bounds = array<i64: 128, 256>}, {pipeline_mode = #tpu.pipeline_mode<synchronous>, transform_indices = @transform_2, window_bounds = array<i64: 1, 256>}, {pipeline_mode = #tpu.pipeline_mode<synchronous>, transform_indices = @transform_3, window_bounds = array<i64: 256, 256>}, {pipeline_mode = #tpu.pipeline_mode<synchronous>, transform_indices = @transform_4, window_bounds = array<i64: 1, 256>}, {pipeline_mode = #tpu.pipeline_mode<synchronous>, transform_indices = @transform_5, window_bounds = array<i64: 256, 256>}, {pipeline_mode = #tpu.pipeline_mode<synchronous>, transform_indices = @transform_6, window_bounds = array<i64: 1, 256>}, {pipeline_mode = #tpu.pipeline_mode<synchronous>, transform_indices = @transform_7, window_bounds = array<i64: 1, 256>}, {pipeline_mode = #tpu.pipeline_mode<synchronous>, transform_indices = @transform_8, window_bounds = array<i64: 1, 1>}, {transform_indices = @transform_9, window_bounds = array<i64: 8, 1>}]} {
    %c0 = arith.constant 0 : index
    %c0_0 = arith.constant 0 : index
    %0 = vector.load %arg1[%c0, %c0_0] : memref<8x128xbf16, #tpu.memory_space<vmem>>, vector<8x128xbf16>
    %c0_1 = arith.constant 0 : index
    %c0_2 = arith.constant 0 : index
    %1 = vector.load %arg2[%c0_1, %c0_2] : memref<128x256xbf16, #tpu.memory_space<vmem>>, vector<128x256xbf16>
    %cst = arith.constant dense<0.000000e+00> : vector<8x256xf32>
    %2 = tpu.matmul %0, %1, %cst {dimension_numbers = #tpu.dot_dimension_numbers<[1], [0], [0], [1], [0, 0, 1, 1], [], []>} : vector<8x128xbf16>, vector<128x256xbf16>, vector<8x256xf32> -> vector<8x256xf32>
    %c0_3 = arith.constant 0 : index
    %c0_4 = arith.constant 0 : index
    %3 = vector.load %arg3[%c0_3, %c0_4] : memref<1x256xf32, #tpu.memory_space<vmem>>, vector<1x256xf32>
    %4 = vector.broadcast %3 : vector<1x256xf32> to vector<8x256xf32>
    %5 = arith.addf %2, %4 : vector<8x256xf32>
    %cst_5 = arith.constant 0.000000e+00 : f32
    %6 = vector.broadcast %cst_5 : f32 to vector<8x256xf32>
    %7 = arith.maximumf %5, %6 : vector<8x256xf32>
    %8 = arith.truncf %7 : vector<8x256xf32> to vector<8x256xbf16>
    %c0_6 = arith.constant 0 : index
    %c0_7 = arith.constant 0 : index
    %9 = vector.load %arg4[%c0_6, %c0_7] : memref<256x256xbf16, #tpu.memory_space<vmem>>, vector<256x256xbf16>
    %cst_8 = arith.constant dense<0.000000e+00> : vector<8x256xf32>
    %10 = tpu.matmul %8, %9, %cst_8 {dimension_numbers = #tpu.dot_dimension_numbers<[1], [0], [0], [1], [0, 0, 1, 1], [], []>} : vector<8x256xbf16>, vector<256x256xbf16>, vector<8x256xf32> -> vector<8x256xf32>
    %c0_9 = arith.constant 0 : index
    %c0_10 = arith.constant 0 : index
    %11 = vector.load %arg5[%c0_9, %c0_10] : memref<1x256xf32, #tpu.memory_space<vmem>>, vector<1x256xf32>
    %12 = vector.broadcast %11 : vector<1x256xf32> to vector<8x256xf32>
    %13 = arith.addf %10, %12 : vector<8x256xf32>
    %cst_11 = arith.constant 0.000000e+00 : f32
    %14 = vector.broadcast %cst_11 : f32 to vector<8x256xf32>
    %15 = arith.maximumf %13, %14 : vector<8x256xf32>
    %16 = arith.truncf %15 : vector<8x256xf32> to vector<8x256xbf16>
    %c0_12 = arith.constant 0 : index
    %c0_13 = arith.constant 0 : index
    %17 = vector.load %arg6[%c0_12, %c0_13] : memref<256x256xbf16, #tpu.memory_space<vmem>>, vector<256x256xbf16>
    %cst_14 = arith.constant dense<0.000000e+00> : vector<8x256xf32>
    %18 = tpu.matmul %16, %17, %cst_14 {dimension_numbers = #tpu.dot_dimension_numbers<[1], [0], [0], [1], [0, 0, 1, 1], [], []>} : vector<8x256xbf16>, vector<256x256xbf16>, vector<8x256xf32> -> vector<8x256xf32>
    %c0_15 = arith.constant 0 : index
    %c0_16 = arith.constant 0 : index
    %19 = vector.load %arg7[%c0_15, %c0_16] : memref<1x256xf32, #tpu.memory_space<vmem>>, vector<1x256xf32>
    %20 = vector.broadcast %19 : vector<1x256xf32> to vector<8x256xf32>
    %21 = arith.addf %18, %20 : vector<8x256xf32>
    %cst_17 = arith.constant 0.000000e+00 : f32
    %22 = vector.broadcast %cst_17 : f32 to vector<8x256xf32>
    %23 = arith.maximumf %21, %22 : vector<8x256xf32>
    %c0_18 = arith.constant 0 : index
    %c0_19 = arith.constant 0 : index
    %24 = vector.load %arg8[%c0_18, %c0_19] : memref<1x256xf32, #tpu.memory_space<vmem>>, vector<1x256xf32>
    %25 = vector.broadcast %24 : vector<1x256xf32> to vector<8x256xf32>
    %26 = arith.mulf %23, %25 : vector<8x256xf32>
    %cst_20 = arith.constant dense<0.000000e+00> : vector<8xf32>
    %27 = vector.multi_reduction <add>, %26, %cst_20 [1] : vector<8x256xf32> to vector<8xf32>
    %28 = vector.shape_cast %27 : vector<8xf32> to vector<8x1xf32>
    %c0_21 = arith.constant 0 : index
    %c0_22 = arith.constant 0 : index
    %29 = vector.load %arg9[%c0_21, %c0_22] : memref<1x1xf32, #tpu.memory_space<vmem>>, vector<1x1xf32>
    %30 = vector.broadcast %29 : vector<1x1xf32> to vector<8x1xf32>
    %31 = arith.addf %28, %30 : vector<8x1xf32>
    %c0_23 = arith.constant 0 : index
    %c0_24 = arith.constant 0 : index
    %32 = vector.load %arg10[%c0_23, %c0_24] : memref<8x1xf32, #tpu.memory_space<vmem>>, vector<8x1xf32>
    tpu.vector_store %arg10[%c0_23, %c0_24], %31 {strides = array<i32>} : memref<8x1xf32, #tpu.memory_space<vmem>>, vector<8x1xf32>,
    return
  }
  func.func @transform_0(%arg0: i32) -> (i32, i32) {
    %c0_i32 = arith.constant 0 : i32
    %c0_i32_0 = arith.constant 0 : i32
    return %arg0, %c0_i32 : i32, i32
  }
  func.func @transform_1(%arg0: i32) -> (i32, i32) {
    %c0_i32 = arith.constant 0 : i32
    %c0_i32_0 = arith.constant 0 : i32
    %c0_i32_1 = arith.constant 0 : i32
    return %c0_i32, %c0_i32_0 : i32, i32
  }
  func.func @transform_2(%arg0: i32) -> (i32, i32) {
    %c0_i32 = arith.constant 0 : i32
    %c0_i32_0 = arith.constant 0 : i32
    %c0_i32_1 = arith.constant 0 : i32
    return %c0_i32, %c0_i32_0 : i32, i32
  }
  func.func @transform_3(%arg0: i32) -> (i32, i32) {
    %c0_i32 = arith.constant 0 : i32
    %c0_i32_0 = arith.constant 0 : i32
    %c0_i32_1 = arith.constant 0 : i32
    return %c0_i32, %c0_i32_0 : i32, i32
  }
  func.func @transform_4(%arg0: i32) -> (i32, i32) {
    %c0_i32 = arith.constant 0 : i32
    %c0_i32_0 = arith.constant 0 : i32
    %c0_i32_1 = arith.constant 0 : i32
    return %c0_i32, %c0_i32_0 : i32, i32
  }
  func.func @transform_5(%arg0: i32) -> (i32, i32) {
    %c0_i32 = arith.constant 0 : i32
    %c0_i32_0 = arith.constant 0 : i32
    %c0_i32_1 = arith.constant 0 : i32
    return %c0_i32, %c0_i32_0 : i32, i32
  }
  func.func @transform_6(%arg0: i32) -> (i32, i32) {
    %c0_i32 = arith.constant 0 : i32
    %c0_i32_0 = arith.constant 0 : i32
    %c0_i32_1 = arith.constant 0 : i32
    return %c0_i32, %c0_i32_0 : i32, i32
  }
  func.func @transform_7(%arg0: i32) -> (i32, i32) {
    %c0_i32 = arith.constant 0 : i32
    %c0_i32_0 = arith.constant 0 : i32
    %c0_i32_1 = arith.constant 0 : i32
    return %c0_i32, %c0_i32_0 : i32, i32
  }
  func.func @transform_8(%arg0: i32) -> (i32, i32) {
    %c0_i32 = arith.constant 0 : i32
    %c0_i32_0 = arith.constant 0 : i32
    %c0_i32_1 = arith.constant 0 : i32
    return %c0_i32, %c0_i32_0 : i32, i32
  }
  func.func @transform_9(%arg0: i32) -> (i32, i32) {
    %c0_i32 = arith.constant 0 : i32
    %c0_i32_0 = arith.constant 0 : i32
    return %arg0, %c0_i32 : i32, i32
  }
}

</mosaic_0001>

<llo_original>
// kernel: tpu_custom_call.1
$region0: #{tpu_custom_call.1}
  #allocation0 [shape = 'u32[]', space=smem, size = 0x4, offset = 0x4, fixed_abs, tag = 'smem constant byte address 0x4 - core index']
  #allocation1 [shape = 'u32[144,128]{1,0:T(1,128)}', space=vmem, size = 0x12000, scoped, tag = 'internal scratch']
  #allocation2 [shape = 'f32[1,1]{1,0:T(1,128)S(1)}', space=vmem, size = 0x200, scoped, tag = 'scoped memory for tpu_custom_call.1']
  %s0 = inlined_call_operand.hbm [shape: bf16[8,128], index: 0, kind: input, shape index: {}]
  %s1 = inlined_call_operand.hbm [shape: bf16[128,256], index: 1, kind: input, shape index: {}]
  %s2 = inlined_call_operand.hbm [shape: f32[1,256], index: 2, kind: input, shape index: {}]
  %s3 = inlined_call_operand.hbm [shape: bf16[256,256], index: 3, kind: input, shape index: {}]
  %s4 = inlined_call_operand.hbm [shape: f32[1,256], index: 4, kind: input, shape index: {}]
  %s5 = inlined_call_operand.hbm [shape: bf16[256,256], index: 5, kind: input, shape index: {}]
  %s6 = inlined_call_operand.hbm [shape: f32[1,256], index: 6, kind: input, shape index: {}]
  %s7 = inlined_call_operand.hbm [shape: f32[1,256], index: 7, kind: input, shape index: {}]
  %s8 = inlined_call_operand.<no memory space> [shape: f32[1,1], index: 8, kind: input, shape index: {}]
  %s9 = inlined_call_operand.hbm [shape: f32[8,1], index: 9, kind: output, shape index: {}]
  %s10 = sld [smem:[#allocation0]]
  $region78: #{tpu_custom_call.1} parent=0
    _
  %s12 = ssub.s32 1, %s10
  %s13 = scalar_select 0, %s12, %s10
  %v14 = vstv %s8
  %15 = vst [vmem:[#allocation2] sm:$0x1] %v14
  $region1: #{tpu_custom_call.1} parent=0
    #allocation3 [shape = 'u8[2048]{0}', space=vmem, size = 0x800, scoped, tag = 'input window, operand 0, single buffered']
    #allocation4 [shape = 's32[1]{0}', space=sflag, size = 0x4, scoped, tag = 'scoped memory for tpu_custom_call.1']
    #allocation5 [shape = 's32[1]{0}', space=sflag, size = 0x4, scoped, tag = 'scoped memory for tpu_custom_call.1']
    #allocation6 [shape = 'u8[65536]{0}', space=vmem, size = 0x10000, scoped, tag = 'input window, operand 1, single buffered']
    #allocation7 [shape = 's32[1]{0}', space=sflag, size = 0x4, scoped, tag = 'scoped memory for tpu_custom_call.1']
    #allocation8 [shape = 'u8[1024]{0}', space=vmem, size = 0x400, scoped, tag = 'input window, operand 2, single buffered']
    #allocation9 [shape = 'u8[131072]{0}', space=vmem, size = 0x20000, scoped, tag = 'input window, operand 3, single buffered']
    #allocation10 [shape = 's32[1]{0}', space=sflag, size = 0x4, scoped, tag = 'scoped memory for tpu_custom_call.1']
    #allocation11 [shape = 'u8[1024]{0}', space=vmem, size = 0x400, scoped, tag = 'input window, operand 4, single buffered']
    #allocation12 [shape = 'u8[131072]{0}', space=vmem, size = 0x20000, scoped, tag = 'input window, operand 5, single buffered']
    #allocation13 [shape = 's32[1]{0}', space=sflag, size = 0x4, scoped, tag = 'scoped memory for tpu_custom_call.1']
    #allocation14 [shape = 'u8[1024]{0}', space=vmem, size = 0x400, scoped, tag = 'input window, operand 6, single buffered']
    #allocation15 [shape = 'u8[1024]{0}', space=vmem, size = 0x400, scoped, tag = 'input window, operand 7, single buffered']
    #allocation16 [shape = 's32[1]{0}', space=sflag, size = 0x4, scoped, tag = 'scoped memory for tpu_custom_call.1']
    #allocation17 [shape = 'u8[4096]{0}', space=vmem, size = 0x1000, scoped, tag = 'output window, operand 0, single buffered']
    %16 = vsyncpa [#allocation4], 0
    %17 = vsyncpa [#allocation7], 0
    %18 = vsyncpa [#allocation10], 0
    %19 = vsyncpa [#allocation13], 0
    %20 = vsyncpa [#allocation16], 0
    %21 = vsyncpa [#allocation5], 0
    // Predicated region
    $region2: #{tpu_custom_call.1} parent=1 // pred_check
      _
    $region3: #{tpu_custom_call.1} parent=1 // pred_check_branch
      %23 = sbr.rel (0) target = $region5
    $region4: #{tpu_custom_call.1} parent=1 // pred_region
      %s25 = ssub.s32 64, 64
      %26 = vsyncadd [#allocation4], %s25
      %s28 = sshll.u32 [#allocation3], 4
      %s29 = int_to_ptr.vmem [resolvable:$true] %s28
      %31 = dma.hbm_to_vmem [thread:$0]  %s0, 64, %s29, [#allocation4]
    $region5: #{tpu_custom_call.1} parent=1 // pred_fallthru
      _
    // Predicated region
    $region6: #{tpu_custom_call.1} parent=1 // pred_check
      _
    $region7: #{tpu_custom_call.1} parent=1 // pred_check_branch
      %33 = sbr.rel (0) target = $region9
    $region8: #{tpu_custom_call.1} parent=1 // pred_region
      %s35 = ssub.s32 2048, 2048
      %36 = vsyncadd [#allocation7], %s35
      %s37 = sshll.u32 [#allocation6], 4
      %s38 = int_to_ptr.vmem [resolvable:$true] %s37
      %43 = dma.hbm_to_vmem [thread:$0]  %s1, 2048, %s38, [#allocation7], 128, 128, 8
    $region9: #{tpu_custom_call.1} parent=1 // pred_fallthru
      _
    // Predicated region
    $region10: #{tpu_custom_call.1} parent=1 // pred_check
      _
    $region11: #{tpu_custom_call.1} parent=1 // pred_check_branch
      %45 = sbr.rel (0) target = $region13
    $region12: #{tpu_custom_call.1} parent=1 // pred_region
      %s47 = ssub.s32 32, 32
      %48 = vsyncadd [#allocation7], %s47
      %s50 = sshll.u32 [#allocation8], 4
      %s51 = int_to_ptr.vmem [resolvable:$true] %s50
      %53 = dma.hbm_to_vmem [thread:$0]  %s2, 32, %s51, [#allocation7]
    $region13: #{tpu_custom_call.1} parent=1 // pred_fallthru
      _
    // Predicated region
    $region14: #{tpu_custom_call.1} parent=1 // pred_check
      _
    $region15: #{tpu_custom_call.1} parent=1 // pred_check_branch
      %55 = sbr.rel (0) target = $region17
    $region16: #{tpu_custom_call.1} parent=1 // pred_region
      %s57 = ssub.s32 4096, 4096
      %58 = vsyncadd [#allocation10], %s57
      %s59 = sshll.u32 [#allocation9], 4
      %s60 = int_to_ptr.vmem [resolvable:$true] %s59
      %65 = dma.hbm_to_vmem [thread:$0]  %s3, 4096, %s60, [#allocation10], 128, 128, 8
    $region17: #{tpu_custom_call.1} parent=1 // pred_fallthru
      _
    // Predicated region
    $region18: #{tpu_custom_call.1} parent=1 // pred_check
      _
    $region19: #{tpu_custom_call.1} parent=1 // pred_check_branch
      %67 = sbr.rel (0) target = $region21
    $region20: #{tpu_custom_call.1} parent=1 // pred_region
      %s69 = ssub.s32 32, 32
      %70 = vsyncadd [#allocation10], %s69
      %s72 = sshll.u32 [#allocation11], 4
      %s73 = int_to_ptr.vmem [resolvable:$true] %s72
      %75 = dma.hbm_to_vmem [thread:$0]  %s4, 32, %s73, [#allocation10]
    $region21: #{tpu_custom_call.1} parent=1 // pred_fallthru
      _
    // Predicated region
    $region22: #{tpu_custom_call.1} parent=1 // pred_check
      _
    $region23: #{tpu_custom_call.1} parent=1 // pred_check_branch
      %77 = sbr.rel (0) target = $region25
    $region24: #{tpu_custom_call.1} parent=1 // pred_region
      %s79 = ssub.s32 4096, 4096
      %80 = vsyncadd [#allocation13], %s79
      %s81 = sshll.u32 [#allocation12], 4
      %s82 = int_to_ptr.vmem [resolvable:$true] %s81
      %87 = dma.hbm_to_vmem [thread:$0]  %s5, 4096, %s82, [#allocation13], 128, 128, 8
    $region25: #{tpu_custom_call.1} parent=1 // pred_fallthru
      _
    // Predicated region
    $region26: #{tpu_custom_call.1} parent=1 // pred_check
      _
    $region27: #{tpu_custom_call.1} parent=1 // pred_check_branch
      %89 = sbr.rel (0) target = $region29
    $region28: #{tpu_custom_call.1} parent=1 // pred_region
      %s91 = ssub.s32 32, 32
      %92 = vsyncadd [#allocation13], %s91
      %s94 = sshll.u32 [#allocation14], 4
      %s95 = int_to_ptr.vmem [resolvable:$true] %s94
      %97 = dma.hbm_to_vmem [thread:$0]  %s6, 32, %s95, [#allocation13]
    $region29: #{tpu_custom_call.1} parent=1 // pred_fallthru
      _
    // Predicated region
    $region30: #{tpu_custom_call.1} parent=1 // pred_check
      _
    $region31: #{tpu_custom_call.1} parent=1 // pred_check_branch
      %99 = sbr.rel (0) target = $region33
    $region32: #{tpu_custom_call.1} parent=1 // pred_region
      %s101 = ssub.s32 32, 32
      %102 = vsyncadd [#allocation16], %s101
      %s104 = sshll.u32 [#allocation15], 4
      %s105 = int_to_ptr.vmem [resolvable:$true] %s104
      %107 = dma.hbm_to_vmem [thread:$0]  %s7, 32, %s105, [#allocation16]
    $region33: #{tpu_custom_call.1} parent=1 // pred_fallthru
      _
    // Predicated region
    $region34: #{tpu_custom_call.1} parent=1 // pred_check
      _
    $region35: #{tpu_custom_call.1} parent=1 // pred_check_branch
      %109 = sbr.rel (0) target = $region37
    $region36: #{tpu_custom_call.1} parent=1 // pred_region
      _
    $region37: #{tpu_custom_call.1} parent=1 // pred_fallthru
      _
    // Predicated region
    $region38: #{tpu_custom_call.1} parent=1 // pred_check
      _
    $region39: #{tpu_custom_call.1} parent=1 // pred_check_branch
      %111 = sbr.rel (0) target = $region41
    $region40: #{tpu_custom_call.1} parent=1 // pred_region
      %112 = dma.done [#allocation4], 64
    $region41: #{tpu_custom_call.1} parent=1 // pred_fallthru
      _
    // Predicated region
    $region42: #{tpu_custom_call.1} parent=1 // pred_check
      _
    $region43: #{tpu_custom_call.1} parent=1 // pred_check_branch
      %114 = sbr.rel (0) target = $region45
    $region44: #{tpu_custom_call.1} parent=1 // pred_region
      %115 = dma.done [#allocation7], 2048
    $region45: #{tpu_custom_call.1} parent=1 // pred_fallthru
      _
    // Predicated region
    $region46: #{tpu_custom_call.1} parent=1 // pred_check
      _
    $region47: #{tpu_custom_call.1} parent=1 // pred_check_branch
      %117 = sbr.rel (0) target = $region49
    $region48: #{tpu_custom_call.1} parent=1 // pred_region
      %118 = dma.done [#allocation7], 32
    $region49: #{tpu_custom_call.1} parent=1 // pred_fallthru
      _
    // Predicated region
    $region50: #{tpu_custom_call.1} parent=1 // pred_check
      _
    $region51: #{tpu_custom_call.1} parent=1 // pred_check_branch
      %120 = sbr.rel (0) target = $region53
    $region52: #{tpu_custom_call.1} parent=1 // pred_region
      %121 = dma.done [#allocation10], 4096
    $region53: #{tpu_custom_call.1} parent=1 // pred_fallthru
      _
    // Predicated region
    $region54: #{tpu_custom_call.1} parent=1 // pred_check
      _
    $region55: #{tpu_custom_call.1} parent=1 // pred_check_branch
      %123 = sbr.rel (0) target = $region57
    $region56: #{tpu_custom_call.1} parent=1 // pred_region
      %124 = dma.done [#allocation10], 32
    $region57: #{tpu_custom_call.1} parent=1 // pred_fallthru
      _
    // Predicated region
    $region58: #{tpu_custom_call.1} parent=1 // pred_check
      _
    $region59: #{tpu_custom_call.1} parent=1 // pred_check_branch
      %126 = sbr.rel (0) target = $region61
    $region60: #{tpu_custom_call.1} parent=1 // pred_region
      %127 = dma.done [#allocation13], 4096
    $region61: #{tpu_custom_call.1} parent=1 // pred_fallthru
      _
    // Predicated region
    $region62: #{tpu_custom_call.1} parent=1 // pred_check
      _
    $region63: #{tpu_custom_call.1} parent=1 // pred_check_branch
      %129 = sbr.rel (0) target = $region65
    $region64: #{tpu_custom_call.1} parent=1 // pred_region
      %130 = dma.done [#allocation13], 32
    $region65: #{tpu_custom_call.1} parent=1 // pred_fallthru
      _
    // Predicated region
    $region66: #{tpu_custom_call.1} parent=1 // pred_check
      _
    $region67: #{tpu_custom_call.1} parent=1 // pred_check_branch
      %132 = sbr.rel (0) target = $region69
    $region68: #{tpu_custom_call.1} parent=1 // pred_region
      %133 = dma.done [#allocation16], 32
    $region69: #{tpu_custom_call.1} parent=1 // pred_fallthru
      _
    %v135 = vld [vmem:[#allocation3] sm:$0xf]
    %v136 = vld [vmem:[#allocation6] sm:$0xff]
    %v137 = vld [vmem:[#allocation6 + $0x8] sm:$0xff]
    %v138 = vld [vmem:[#allocation6 + $0x10] sm:$0xff]
    %v139 = vld [vmem:[#allocation6 + $0x18] sm:$0xff]
    %v140 = vld [vmem:[#allocation6 + $0x20] sm:$0xff]
    %v141 = vld [vmem:[#allocation6 + $0x28] sm:$0xff]
    %v142 = vld [vmem:[#allocation6 + $0x30] sm:$0xff]
    %v143 = vld [vmem:[#allocation6 + $0x38] sm:$0xff]
    %v144 = vld [vmem:[#allocation6 + $0x40] sm:$0xff]
    %v145 = vld [vmem:[#allocation6 + $0x48] sm:$0xff]
    %v146 = vld [vmem:[#allocation6 + $0x50] sm:$0xff]
    %v147 = vld [vmem:[#allocation6 + $0x58] sm:$0xff]
    %v148 = vld [vmem:[#allocation6 + $0x60] sm:$0xff]
    %v149 = vld [vmem:[#allocation6 + $0x68] sm:$0xff]
    %v150 = vld [vmem:[#allocation6 + $0x70] sm:$0xff]
    %v151 = vld [vmem:[#allocation6 + $0x78] sm:$0xff]
    %v152 = vld [vmem:[#allocation8] sm:$0x3]
    %v154 = vlaneseq
    %v155 = vshrl.u32 %v154, 7
    %v156 = vsub.s32 0, %v155
    %v157 = vrot.slane %v152, %v156
    %v158 = vlaneseq
    %v159 = vshrl.u32 %v158, 7
    %v160 = vsub.s32 1, %v159
    %v161 = vrot.slane %v152, %v160
    %v180 = vunpack.c.l.b16 %v136
    %v181 = vunpack.c.h.b16 %v136
    %v182 = vunpack.c.l.b16 %v137
    %v183 = vunpack.c.h.b16 %v137
    %v184 = vunpack.c.l.b16 %v138
    %v185 = vunpack.c.h.b16 %v138
    %v186 = vunpack.c.l.b16 %v139
    %v187 = vunpack.c.h.b16 %v139
    %v188 = vunpack.c.l.b16 %v140
    %v189 = vunpack.c.h.b16 %v140
    %v190 = vunpack.c.l.b16 %v141
    %v191 = vunpack.c.h.b16 %v141
    %v192 = vunpack.c.l.b16 %v142
    %v193 = vunpack.c.h.b16 %v142
    %v194 = vunpack.c.l.b16 %v143
    %v195 = vunpack.c.h.b16 %v143
    %v196 = vunpack.c.l.b16 %v144
    %v197 = vunpack.c.h.b16 %v144
    %v198 = vunpack.c.l.b16 %v145
    %v199 = vunpack.c.h.b16 %v145
    %v200 = vunpack.c.l.b16 %v146
    %v201 = vunpack.c.h.b16 %v146
    %v202 = vunpack.c.l.b16 %v147
    %v203 = vunpack.c.h.b16 %v147
    %v204 = vunpack.c.l.b16 %v148
    %v205 = vunpack.c.h.b16 %v148
    %v206 = vunpack.c.l.b16 %v149
    %v207 = vunpack.c.h.b16 %v149
    %v208 = vunpack.c.l.b16 %v150
    %v209 = vunpack.c.h.b16 %v150
    %v210 = vunpack.c.l.b16 %v151
    %v211 = vunpack.c.h.b16 %v151
    %v212 = vpack.c.b16 %v182, %v180
    %v213 = vpack.c.b16 %v183, %v181
    %v214 = vpack.c.b16 %v186, %v184
    %v215 = vpack.c.b16 %v187, %v185
    %v216 = vpack.c.b16 %v190, %v188
    %v217 = vpack.c.b16 %v191, %v189
    %v218 = vpack.c.b16 %v194, %v192
    %v219 = vpack.c.b16 %v195, %v193
    %v220 = vpack.c.b16 %v198, %v196
    %v221 = vpack.c.b16 %v199, %v197
    %v222 = vpack.c.b16 %v202, %v200
    %v223 = vpack.c.b16 %v203, %v201
    %v224 = vpack.c.b16 %v206, %v204
    %v225 = vpack.c.b16 %v207, %v205
    %v226 = vpack.c.b16 %v210, %v208
    %v227 = vpack.c.b16 %v211, %v209
    %244 = vmatprep.subr.bf16.mxu0 %v213
    %245 = vmatpush1.bf16.msra.mxu0 %v212
    %246 = vmatprep.subr.bf16.mxu0 %v215
    %247 = vmatpush1.bf16.msra.mxu0 %v214
    %248 = vmatprep.subr.bf16.mxu0 %v217
    %249 = vmatpush1.bf16.msra.mxu0 %v216
    %250 = vmatprep.subr.bf16.mxu0 %v219
    %251 = vmatpush1.bf16.msra.mxu0 %v218
    %252 = vmatprep.subr.bf16.mxu0 %v221
    %253 = vmatpush1.bf16.msra.mxu0 %v220
    %254 = vmatprep.subr.bf16.mxu0 %v223
    %255 = vmatpush1.bf16.msra.mxu0 %v222
    %256 = vmatprep.subr.bf16.mxu0 %v225
    %257 = vmatpush1.bf16.msra.mxu0 %v224
    %258 = vmatprep.subr.bf16.mxu0 %v227
    %259 = vmatpush1.bf16.msra.mxu0 %v226
    %260 = vmatprep.subr.bf16.mxu0 0
    %261 = vmatpush1.bf16.msra.mxu0 0
    %262 = vmatprep.subr.bf16.mxu0 0
    %263 = vmatpush1.bf16.msra.mxu0 0
    %264 = vmatprep.subr.bf16.mxu0 0
    %265 = vmatpush1.bf16.msra.mxu0 0
    %266 = vmatprep.subr.bf16.mxu0 0
    %267 = vmatpush1.bf16.msra.mxu0 0
    %268 = vmatprep.subr.bf16.mxu0 0
    %269 = vmatpush1.bf16.msra.mxu0 0
    %270 = vmatprep.subr.bf16.mxu0 0
    %271 = vmatpush1.bf16.msra.mxu0 0
    %272 = vmatprep.subr.bf16.mxu0 0
    %273 = vmatpush1.bf16.msra.mxu0 0
    %274 = vmatprep.subr.bf16.mxu0 0
    %275 = vmatpush1.bf16.msra.mxu0 0
    %276 = vmatprep.mubr.bf16.mxu0 0
    %277 = vmatmul.mubr.bf16.gmra.mrb[0].mxu0 %v135
    %v278 = vpop.f32.mrb[0].mxu0
    %v279 = vadd.f32 %v157, %v278
    %v280 = vpop.f32.mrb[0].mxu0
    %v281 = vadd.f32 %v161, %v280
    %v282 = vpop.f32.mrb[0].mxu0
    %v283 = vpop.f32.mrb[0].mxu0
    %284 = vdwg.mxu0
    %v285 = vmax.f32 %v279, 0.0
    %v286 = vmax.f32 %v281, 0.0
    %v287 = vpack.c.bf16 %v285, %v285
    %v288 = vpack.c.bf16 %v286, %v286
    %v289 = vld [vmem:[#allocation9] sm:$0xff]
    %v290 = vld [vmem:[#allocation9 + $0x8] sm:$0xff]
    %v291 = vld [vmem:[#allocation9 + $0x10] sm:$0xff]
    %v292 = vld [vmem:[#allocation9 + $0x18] sm:$0xff]
    %v293 = vld [vmem:[#allocation9 + $0x20] sm:$0xff]
    %v294 = vld [vmem:[#allocation9 + $0x28] sm:$0xff]
    %v295 = vld [vmem:[#allocation9 + $0x30] sm:$0xff]
    %v296 = vld [vmem:[#allocation9 + $0x38] sm:$0xff]
    %v297 = vld [vmem:[#allocation9 + $0x40] sm:$0xff]
    %v298 = vld [vmem:[#allocation9 + $0x48] sm:$0xff]
    %v299 = vld [vmem:[#allocation9 + $0x50] sm:$0xff]
    %v300 = vld [vmem:[#allocation9 + $0x58] sm:$0xff]
    %v301 = vld [vmem:[#allocation9 + $0x60] sm:$0xff]
    %v302 = vld [vmem:[#allocation9 + $0x68] sm:$0xff]
    %v303 = vld [vmem:[#allocation9 + $0x70] sm:$0xff]
    %v304 = vld [vmem:[#allocation9 + $0x78] sm:$0xff]
    %v305 = vld [vmem:[#allocation9 + $0x80] sm:$0xff]
    %v306 = vld [vmem:[#allocation9 + $0x88] sm:$0xff]
    %v307 = vld [vmem:[#allocation9 + $0x90] sm:$0xff]
    %v308 = vld [vmem:[#allocation9 + $0x98] sm:$0xff]
    %v309 = vld [vmem:[#allocation9 + $0xa0] sm:$0xff]
    %v310 = vld [vmem:[#allocation9 + $0xa8] sm:$0xff]
    %v311 = vld [vmem:[#allocation9 + $0xb0] sm:$0xff]
    %v312 = vld [vmem:[#allocation9 + $0xb8] sm:$0xff]
    %v313 = vld [vmem:[#allocation9 + $0xc0] sm:$0xff]
    %v314 = vld [vmem:[#allocation9 + $0xc8] sm:$0xff]
    %v315 = vld [vmem:[#allocation9 + $0xd0] sm:$0xff]
    %v316 = vld [vmem:[#allocation9 + $0xd8] sm:$0xff]
    %v317 = vld [vmem:[#allocation9 + $0xe0] sm:$0xff]
    %v318 = vld [vmem:[#allocation9 + $0xe8] sm:$0xff]
    %v319 = vld [vmem:[#allocation9 + $0xf0] sm:$0xff]
    %v320 = vld [vmem:[#allocation9 + $0xf8] sm:$0xff]
    %v321 = vld [vmem:[#allocation11] sm:$0x3]
    %v323 = vlaneseq
    %v324 = vshrl.u32 %v323, 7
    %v325 = vsub.s32 0, %v324
    %v326 = vrot.slane %v321, %v325
    %v327 = vlaneseq
    %v328 = vshrl.u32 %v327, 7
    %v329 = vsub.s32 1, %v328
    %v330 = vrot.slane %v321, %v329
    %v365 = vunpack.c.l.b16 %v289
    %v366 = vunpack.c.h.b16 %v289
    %v367 = vunpack.c.l.b16 %v290
    %v368 = vunpack.c.h.b16 %v290
    %v369 = vunpack.c.l.b16 %v291
    %v370 = vunpack.c.h.b16 %v291
    %v371 = vunpack.c.l.b16 %v292
    %v372 = vunpack.c.h.b16 %v292
    %v373 = vunpack.c.l.b16 %v293
    %v374 = vunpack.c.h.b16 %v293
    %v375 = vunpack.c.l.b16 %v294
    %v376 = vunpack.c.h.b16 %v294
    %v377 = vunpack.c.l.b16 %v295
    %v378 = vunpack.c.h.b16 %v295
    %v379 = vunpack.c.l.b16 %v296
    %v380 = vunpack.c.h.b16 %v296
    %v381 = vunpack.c.l.b16 %v297
    %v382 = vunpack.c.h.b16 %v297
    %v383 = vunpack.c.l.b16 %v298
    %v384 = vunpack.c.h.b16 %v298
    %v385 = vunpack.c.l.b16 %v299
    %v386 = vunpack.c.h.b16 %v299
    %v387 = vunpack.c.l.b16 %v300
    %v388 = vunpack.c.h.b16 %v300
    %v389 = vunpack.c.l.b16 %v301
    %v390 = vunpack.c.h.b16 %v301
    %v391 = vunpack.c.l.b16 %v302
    %v392 = vunpack.c.h.b16 %v302
    %v393 = vunpack.c.l.b16 %v303
    %v394 = vunpack.c.h.b16 %v303
    %v395 = vunpack.c.l.b16 %v304
    %v396 = vunpack.c.h.b16 %v304
    %v397 = vunpack.c.l.b16 %v305
    %v398 = vunpack.c.h.b16 %v305
    %v399 = vunpack.c.l.b16 %v306
    %v400 = vunpack.c.h.b16 %v306
    %v401 = vunpack.c.l.b16 %v307
    %v402 = vunpack.c.h.b16 %v307
    %v403 = vunpack.c.l.b16 %v308
    %v404 = vunpack.c.h.b16 %v308
    %v405 = vunpack.c.l.b16 %v309
    %v406 = vunpack.c.h.b16 %v309
    %v407 = vunpack.c.l.b16 %v310
    %v408 = vunpack.c.h.b16 %v310
    %v409 = vunpack.c.l.b16 %v311
    %v410 = vunpack.c.h.b16 %v311
    %v411 = vunpack.c.l.b16 %v312
    %v412 = vunpack.c.h.b16 %v312
    %v413 = vunpack.c.l.b16 %v313
    %v414 = vunpack.c.h.b16 %v313
    %v415 = vunpack.c.l.b16 %v314
    %v416 = vunpack.c.h.b16 %v314
    %v417 = vunpack.c.l.b16 %v315
    %v418 = vunpack.c.h.b16 %v315
    %v419 = vunpack.c.l.b16 %v316
    %v420 = vunpack.c.h.b16 %v316
    %v421 = vunpack.c.l.b16 %v317
    %v422 = vunpack.c.h.b16 %v317
    %v423 = vunpack.c.l.b16 %v318
    %v424 = vunpack.c.h.b16 %v318
    %v425 = vunpack.c.l.b16 %v319
    %v426 = vunpack.c.h.b16 %v319
    %v427 = vunpack.c.l.b16 %v320
    %v428 = vunpack.c.h.b16 %v320
    %v429 = vpack.c.b16 %v367, %v365
    %v430 = vpack.c.b16 %v368, %v366
    %v431 = vpack.c.b16 %v371, %v369
    %v432 = vpack.c.b16 %v372, %v370
    %v433 = vpack.c.b16 %v375, %v373
    %v434 = vpack.c.b16 %v376, %v374
    %v435 = vpack.c.b16 %v379, %v377
    %v436 = vpack.c.b16 %v380, %v378
    %v437 = vpack.c.b16 %v383, %v381
    %v438 = vpack.c.b16 %v384, %v382
    %v439 = vpack.c.b16 %v387, %v385
    %v440 = vpack.c.b16 %v388, %v386
    %v441 = vpack.c.b16 %v391, %v389
    %v442 = vpack.c.b16 %v392, %v390
    %v443 = vpack.c.b16 %v395, %v393
    %v444 = vpack.c.b16 %v396, %v394
    %v445 = vpack.c.b16 %v399, %v397
    %v446 = vpack.c.b16 %v400, %v398
    %v447 = vpack.c.b16 %v403, %v401
    %v448 = vpack.c.b16 %v404, %v402
    %v449 = vpack.c.b16 %v407, %v405
    %v450 = vpack.c.b16 %v408, %v406
    %v451 = vpack.c.b16 %v411, %v409
    %v452 = vpack.c.b16 %v412, %v410
    %v453 = vpack.c.b16 %v415, %v413
    %v454 = vpack.c.b16 %v416, %v414
    %v455 = vpack.c.b16 %v419, %v417
    %v456 = vpack.c.b16 %v420, %v418
    %v457 = vpack.c.b16 %v423, %v421
    %v458 = vpack.c.b16 %v424, %v422
    %v459 = vpack.c.b16 %v427, %v425
    %v460 = vpack.c.b16 %v428, %v426
    %493 = vmatprep.subr.bf16.mxu0 %v430
    %494 = vmatpush1.bf16.msra.mxu0 %v429
    %495 = vmatprep.subr.bf16.mxu0 %v432
    %496 = vmatpush1.bf16.msra.mxu0 %v431
    %497 = vmatprep.subr.bf16.mxu0 %v434
    %498 = vmatpush1.bf16.msra.mxu0 %v433
    %499 = vmatprep.subr.bf16.mxu0 %v436
    %500 = vmatpush1.bf16.msra.mxu0 %v435
    %501 = vmatprep.subr.bf16.mxu0 %v438
    %502 = vmatpush1.bf16.msra.mxu0 %v437
    %503 = vmatprep.subr.bf16.mxu0 %v440
    %504 = vmatpush1.bf16.msra.mxu0 %v439
    %505 = vmatprep.subr.bf16.mxu0 %v442
    %506 = vmatpush1.bf16.msra.mxu0 %v441
    %507 = vmatprep.subr.bf16.mxu0 %v444
    %508 = vmatpush1.bf16.msra.mxu0 %v443
    %509 = vmatprep.subr.bf16.mxu0 %v446
    %510 = vmatpush1.bf16.msra.mxu0 %v445
    %511 = vmatprep.subr.bf16.mxu0 %v448
    %512 = vmatpush1.bf16.msra.mxu0 %v447
    %513 = vmatprep.subr.bf16.mxu0 %v450
    %514 = vmatpush1.bf16.msra.mxu0 %v449
    %515 = vmatprep.subr.bf16.mxu0 %v452
    %516 = vmatpush1.bf16.msra.mxu0 %v451
    %517 = vmatprep.subr.bf16.mxu0 %v454
    %518 = vmatpush1.bf16.msra.mxu0 %v453
    %519 = vmatprep.subr.bf16.mxu0 %v456
    %520 = vmatpush1.bf16.msra.mxu0 %v455
    %521 = vmatprep.subr.bf16.mxu0 %v458
    %522 = vmatpush1.bf16.msra.mxu0 %v457
    %523 = vmatprep.subr.bf16.mxu0 %v460
    %524 = vmatpush1.bf16.msra.mxu0 %v459
    %525 = vmatprep.mubr.bf16.mxu0 %v288
    %526 = vmatmul.mubr.bf16.gmra.mrb[0].mxu0 %v287
    %v527 = vpop.f32.mrb[0].mxu0
    %v528 = vadd.f32 %v326, %v527
    %v529 = vpop.f32.mrb[0].mxu0
    %v530 = vadd.f32 %v330, %v529
    %v531 = vpop.f32.mrb[0].mxu0
    %v532 = vpop.f32.mrb[0].mxu0
    %533 = vdwg.mxu0
    %v534 = vmax.f32 %v528, 0.0
    %v535 = vmax.f32 %v530, 0.0
    %v536 = vpack.c.bf16 %v534, %v534
    %v537 = vpack.c.bf16 %v535, %v535
    %v538 = vld [vmem:[#allocation12] sm:$0xff]
    %v539 = vld [vmem:[#allocation12 + $0x8] sm:$0xff]
    %v540 = vld [vmem:[#allocation12 + $0x10] sm:$0xff]
    %v541 = vld [vmem:[#allocation12 + $0x18] sm:$0xff]
    %v542 = vld [vmem:[#allocation12 + $0x20] sm:$0xff]
    %v543 = vld [vmem:[#allocation12 + $0x28] sm:$0xff]
    %v544 = vld [vmem:[#allocation12 + $0x30] sm:$0xff]
    %v545 = vld [vmem:[#allocation12 + $0x38] sm:$0xff]
    %v546 = vld [vmem:[#allocation12 + $0x40] sm:$0xff]
    %v547 = vld [vmem:[#allocation12 + $0x48] sm:$0xff]
    %v548 = vld [vmem:[#allocation12 + $0x50] sm:$0xff]
    %v549 = vld [vmem:[#allocation12 + $0x58] sm:$0xff]
    %v550 = vld [vmem:[#allocation12 + $0x60] sm:$0xff]
    %v551 = vld [vmem:[#allocation12 + $0x68] sm:$0xff]
    %v552 = vld [vmem:[#allocation12 + $0x70] sm:$0xff]
    %v553 = vld [vmem:[#allocation12 + $0x78] sm:$0xff]
    %v554 = vld [vmem:[#allocation12 + $0x80] sm:$0xff]
    %v555 = vld [vmem:[#allocation12 + $0x88] sm:$0xff]
    %v556 = vld [vmem:[#allocation12 + $0x90] sm:$0xff]
    %v557 = vld [vmem:[#allocation12 + $0x98] sm:$0xff]
    %v558 = vld [vmem:[#allocation12 + $0xa0] sm:$0xff]
    %v559 = vld [vmem:[#allocation12 + $0xa8] sm:$0xff]
    %v560 = vld [vmem:[#allocation12 + $0xb0] sm:$0xff]
    %v561 = vld [vmem:[#allocation12 + $0xb8] sm:$0xff]
    %v562 = vld [vmem:[#allocation12 + $0xc0] sm:$0xff]
    %v563 = vld [vmem:[#allocation12 + $0xc8] sm:$0xff]
    %v564 = vld [vmem:[#allocation12 + $0xd0] sm:$0xff]
    %v565 = vld [vmem:[#allocation12 + $0xd8] sm:$0xff]
    %v566 = vld [vmem:[#allocation12 + $0xe0] sm:$0xff]
    %v567 = vld [vmem:[#allocation12 + $0xe8] sm:$0xff]
    %v568 = vld [vmem:[#allocation12 + $0xf0] sm:$0xff]
    %v569 = vld [vmem:[#allocation12 + $0xf8] sm:$0xff]
    %v570 = vld [vmem:[#allocation14] sm:$0x3]
    %v572 = vlaneseq
    %v573 = vshrl.u32 %v572, 7
    %v574 = vsub.s32 0, %v573
    %v575 = vrot.slane %v570, %v574
    %v576 = vlaneseq
    %v577 = vshrl.u32 %v576, 7
    %v578 = vsub.s32 1, %v577
    %v579 = vrot.slane %v570, %v578
    %v614 = vunpack.c.l.b16 %v538
    %v615 = vunpack.c.h.b16 %v538
    %v616 = vunpack.c.l.b16 %v539
    %v617 = vunpack.c.h.b16 %v539
    %v618 = vunpack.c.l.b16 %v540
    %v619 = vunpack.c.h.b16 %v540
    %v620 = vunpack.c.l.b16 %v541
    %v621 = vunpack.c.h.b16 %v541
    %v622 = vunpack.c.l.b16 %v542
    %v623 = vunpack.c.h.b16 %v542
    %v624 = vunpack.c.l.b16 %v543
    %v625 = vunpack.c.h.b16 %v543
    %v626 = vunpack.c.l.b16 %v544
    %v627 = vunpack.c.h.b16 %v544
    %v628 = vunpack.c.l.b16 %v545
    %v629 = vunpack.c.h.b16 %v545
    %v630 = vunpack.c.l.b16 %v546
    %v631 = vunpack.c.h.b16 %v546
    %v632 = vunpack.c.l.b16 %v547
    %v633 = vunpack.c.h.b16 %v547
    %v634 = vunpack.c.l.b16 %v548
    %v635 = vunpack.c.h.b16 %v548
    %v636 = vunpack.c.l.b16 %v549
    %v637 = vunpack.c.h.b16 %v549
    %v638 = vunpack.c.l.b16 %v550
    %v639 = vunpack.c.h.b16 %v550
    %v640 = vunpack.c.l.b16 %v551
    %v641 = vunpack.c.h.b16 %v551
    %v642 = vunpack.c.l.b16 %v552
    %v643 = vunpack.c.h.b16 %v552
    %v644 = vunpack.c.l.b16 %v553
    %v645 = vunpack.c.h.b16 %v553
    %v646 = vunpack.c.l.b16 %v554
    %v647 = vunpack.c.h.b16 %v554
    %v648 = vunpack.c.l.b16 %v555
    %v649 = vunpack.c.h.b16 %v555
    %v650 = vunpack.c.l.b16 %v556
    %v651 = vunpack.c.h.b16 %v556
    %v652 = vunpack.c.l.b16 %v557
    %v653 = vunpack.c.h.b16 %v557
    %v654 = vunpack.c.l.b16 %v558
    %v655 = vunpack.c.h.b16 %v558
    %v656 = vunpack.c.l.b16 %v559
    %v657 = vunpack.c.h.b16 %v559
    %v658 = vunpack.c.l.b16 %v560
    %v659 = vunpack.c.h.b16 %v560
    %v660 = vunpack.c.l.b16 %v561
    %v661 = vunpack.c.h.b16 %v561
    %v662 = vunpack.c.l.b16 %v562
    %v663 = vunpack.c.h.b16 %v562
    %v664 = vunpack.c.l.b16 %v563
    %v665 = vunpack.c.h.b16 %v563
    %v666 = vunpack.c.l.b16 %v564
    %v667 = vunpack.c.h.b16 %v564
    %v668 = vunpack.c.l.b16 %v565
    %v669 = vunpack.c.h.b16 %v565
    %v670 = vunpack.c.l.b16 %v566
    %v671 = vunpack.c.h.b16 %v566
    %v672 = vunpack.c.l.b16 %v567
    %v673 = vunpack.c.h.b16 %v567
    %v674 = vunpack.c.l.b16 %v568
    %v675 = vunpack.c.h.b16 %v568
    %v676 = vunpack.c.l.b16 %v569
    %v677 = vunpack.c.h.b16 %v569
    %v678 = vpack.c.b16 %v616, %v614
    %v679 = vpack.c.b16 %v617, %v615
    %v680 = vpack.c.b16 %v620, %v618
    %v681 = vpack.c.b16 %v621, %v619
    %v682 = vpack.c.b16 %v624, %v622
    %v683 = vpack.c.b16 %v625, %v623
    %v684 = vpack.c.b16 %v628, %v626
    %v685 = vpack.c.b16 %v629, %v627
    %v686 = vpack.c.b16 %v632, %v630
    %v687 = vpack.c.b16 %v633, %v631
    %v688 = vpack.c.b16 %v636, %v634
    %v689 = vpack.c.b16 %v637, %v635
    %v690 = vpack.c.b16 %v640, %v638
    %v691 = vpack.c.b16 %v641, %v639
    %v692 = vpack.c.b16 %v644, %v642
    %v693 = vpack.c.b16 %v645, %v643
    %v694 = vpack.c.b16 %v648, %v646
    %v695 = vpack.c.b16 %v649, %v647
    %v696 = vpack.c.b16 %v652, %v650
    %v697 = vpack.c.b16 %v653, %v651
    %v698 = vpack.c.b16 %v656, %v654
    %v699 = vpack.c.b16 %v657, %v655
    %v700 = vpack.c.b16 %v660, %v658
    %v701 = vpack.c.b16 %v661, %v659
    %v702 = vpack.c.b16 %v664, %v662
    %v703 = vpack.c.b16 %v665, %v663
    %v704 = vpack.c.b16 %v668, %v666
    %v705 = vpack.c.b16 %v669, %v667
    %v706 = vpack.c.b16 %v672, %v670
    %v707 = vpack.c.b16 %v673, %v671
    %v708 = vpack.c.b16 %v676, %v674
    %v709 = vpack.c.b16 %v677, %v675
    %742 = vmatprep.subr.bf16.mxu0 %v679
    %743 = vmatpush1.bf16.msra.mxu0 %v678
    %744 = vmatprep.subr.bf16.mxu0 %v681
    %745 = vmatpush1.bf16.msra.mxu0 %v680
    %746 = vmatprep.subr.bf16.mxu0 %v683
    %747 = vmatpush1.bf16.msra.mxu0 %v682
    %748 = vmatprep.subr.bf16.mxu0 %v685
    %749 = vmatpush1.bf16.msra.mxu0 %v684
    %750 = vmatprep.subr.bf16.mxu0 %v687
    %751 = vmatpush1.bf16.msra.mxu0 %v686
    %752 = vmatprep.subr.bf16.mxu0 %v689
    %753 = vmatpush1.bf16.msra.mxu0 %v688
    %754 = vmatprep.subr.bf16.mxu0 %v691
    %755 = vmatpush1.bf16.msra.mxu0 %v690
    %756 = vmatprep.subr.bf16.mxu0 %v693
    %757 = vmatpush1.bf16.msra.mxu0 %v692
    %758 = vmatprep.subr.bf16.mxu0 %v695
    %759 = vmatpush1.bf16.msra.mxu0 %v694
    %760 = vmatprep.subr.bf16.mxu0 %v697
    %761 = vmatpush1.bf16.msra.mxu0 %v696
    %762 = vmatprep.subr.bf16.mxu0 %v699
    %763 = vmatpush1.bf16.msra.mxu0 %v698
    %764 = vmatprep.subr.bf16.mxu0 %v701
    %765 = vmatpush1.bf16.msra.mxu0 %v700
    %766 = vmatprep.subr.bf16.mxu0 %v703
    %767 = vmatpush1.bf16.msra.mxu0 %v702
    %768 = vmatprep.subr.bf16.mxu0 %v705
    %769 = vmatpush1.bf16.msra.mxu0 %v704
    %770 = vmatprep.subr.bf16.mxu0 %v707
    %771 = vmatpush1.bf16.msra.mxu0 %v706
    %772 = vmatprep.subr.bf16.mxu0 %v709
    %773 = vmatpush1.bf16.msra.mxu0 %v708
    %774 = vmatprep.mubr.bf16.mxu0 %v537
    %775 = vmatmul.mubr.bf16.gmra.mrb[0].mxu0 %v536
    %v776 = vpop.f32.mrb[0].mxu0
    %v777 = vadd.f32 %v575, %v776
    %v778 = vpop.f32.mrb[0].mxu0
    %v779 = vadd.f32 %v579, %v778
    %v780 = vpop.f32.mrb[0].mxu0
    %v781 = vpop.f32.mrb[0].mxu0
    %782 = vdwg.mxu0
    %v783 = vmax.f32 %v777, 0.0
    %v784 = vmax.f32 %v779, 0.0
    %v785 = vld [vmem:[#allocation15] sm:$0x3]
    %v787 = vlaneseq
    %v788 = vshrl.u32 %v787, 7
    %v789 = vsub.s32 0, %v788
    %v790 = vrot.slane %v785, %v789
    %v791 = vlaneseq
    %v792 = vshrl.u32 %v791, 7
    %v793 = vsub.s32 1, %v792
    %v794 = vrot.slane %v785, %v793
    %v797 = vmul.f32 %v783, %v790
    %v798 = vmul.f32 %v784, %v794
    %v799 = vadd.f32 %v797, %v798
    %800 = vadd.xlane.f32.xlu0 %v799
    %v801 = vpop.xlane.xlu0 %800
    %v802 = vld [vmem:[#allocation2] sm:$0x1]
    %v804 = vlaneseq
    %v805 = vshrl.u32 %v804, 7
    %v806 = vsub.s32 0, %v805
    %v807 = vrot.slane %v802, %v806
    %v809 = vadd.f32 %v801, %v807
    %vm810 = vcmask 7168
    %811 = vst.msk [vmem:[#allocation17] sm:$0xff] %vm810, %v809
    // Predicated region
    $region70: #{tpu_custom_call.1} parent=1 // pred_check
      _
    $region71: #{tpu_custom_call.1} parent=1 // pred_check_branch
      %813 = sbr.rel (0) target = $region73
    $region72: #{tpu_custom_call.1} parent=1 // pred_region
      %s815 = ssub.s32 128, 128
      %816 = vsyncadd [#allocation5], %s815
      %s818 = sshll.u32 [#allocation17], 4
      %s819 = int_to_ptr.vmem [resolvable:$true] %s818
      %821 = dma.vmem_to_hbm [thread:$0]  %s819, 128, %s9, [#allocation5]
    $region73: #{tpu_custom_call.1} parent=1 // pred_fallthru
      _
    // Predicated region
    $region74: #{tpu_custom_call.1} parent=1 // pred_check
      _
    $region75: #{tpu_custom_call.1} parent=1 // pred_check_branch
      %823 = sbr.rel (0) target = $region77
    $region76: #{tpu_custom_call.1} parent=1 // pred_region
      %824 = dma.done [#allocation5], 128
    $region77: #{tpu_custom_call.1} parent=1 // pred_fallthru
      _
    %825 = vsyncpa [#allocation4], 1
    %826 = vsyncpa [#allocation7], 1
    %827 = vsyncpa [#allocation10], 1
    %828 = vsyncpa [#allocation13], 1
    %829 = vsyncpa [#allocation16], 1
    %830 = vsyncpa [#allocation5], 1

</llo_original>
